<compile_context>
chip_gen: v7x
topology: tpu7x:2x2x1
jax: 0.10.0
libtpu: 0.0.40
codegen_flags: <defaults>
</compile_context>

<pallas_src>
import functools
import math

import jax
import jax.numpy as jnp
import numpy as np
from jax.experimental import pallas as pl
from jax.experimental.pallas import tpu as pltpu


def _round_up(x, m):
    return (x + m - 1) // m * m


@functools.lru_cache(maxsize=None)
def _roll_subtracts():
    """Probe pltpu.roll's shift convention once on device.

    Returns True iff roll(x, r, axis)[i] == x[(i - r) % n] (i.e. identical to jnp.roll),
    so the conv neighbor shifts stay correct regardless of the rotate-direction convention.
    """
    def k(x_ref, o_ref):
        o_ref[...] = pltpu.roll(x_ref[...], 1, axis=1)

    with jax.ensure_compile_time_eval():
        x = jax.lax.broadcasted_iota(jnp.int32, (8, 128), 1)
        y = pl.pallas_call(k, out_shape=jax.ShapeDtypeStruct((8, 128), jnp.int32))(x)
        return bool(int(y[0, 0]) == 127)


def _block_kernel(x_ref, w1_ref, w2_ref, w3_ref, o_ref, *, D, H, W, alpha, eps,
                  roll_subtracts):
    HW = H * W
    S = D * HW
    x = x_ref[0]            # (C_pad, S) f32 -- also the residual, stays resident in VMEM
    w3 = w3_ref[...]        # (planes_pad, C_pad) bf16

    # ---- Boundary-validity masks, hoisted once and shared by both 3x3x3 convs ----------
    s_idx = jax.lax.broadcasted_iota(jnp.int32, (1, S), 1)
    d_idx = s_idx // HW
    h_idx = (s_idx // W) % H
    w_idx = s_idx % W
    d_mask = {od: (d_idx + od >= 0) & (d_idx + od < D) for od in (-1, 1)}
    hw_mask = {}
    for oh in (-1, 0, 1):
        mh = (h_idx + oh >= 0) & (h_idx + oh < H)
        for ow in (-1, 0, 1):
            if (oh, ow) == (0, 0):
                continue
            mw = (w_idx + ow >= 0) & (w_idx + ow < W)
            hw_mask[(oh, ow)] = mh & mw

    def shift(v, delta):
        # shifted[:, s] = v[:, (s + delta) % S]
        if delta == 0:
            return v
        r = (-delta) % S if roll_subtracts else delta % S
        return pltpu.roll(v, r, axis=1)

    def conv3x3x3(v, w_ref):
        # Shared-HW im2col: ONE (9*C_pad, S) patch matrix (tap-major, channel-minor) built
        # from 8 lane rolls and reused by the three kd-plane GEMMs; the +-HW depth offset
        # is applied to the (C_out, S) partial sums (column shift commutes with the GEMM),
        # with d-boundary masking so wrapped lanes never contribute.
        taps = []
        for oh in (-1, 0, 1):
            for ow in (-1, 0, 1):
                if (oh, ow) == (0, 0):
                    taps.append(v)
                else:
                    taps.append(jnp.where(hw_mask[(oh, ow)], shift(v, oh * W + ow), 0.0))
        patches = jnp.concatenate(taps, axis=0).astype(jnp.bfloat16)   # (9*C_pad, S) bf16
        c_out = w_ref.shape[1]
        acc = jnp.zeros((c_out, S), jnp.float32)
        for gi, od in enumerate((-1, 0, 1)):                           # kd = od + 1
            part = jnp.dot(w_ref[gi], patches, preferred_element_type=jnp.float32)
            if od == 0:
                acc = acc + part
            else:
                acc = acc + jnp.where(d_mask[od], shift(part, od * HW), 0.0)
        return acc

    def inorm(y):
        # One-pass InstanceNorm over the spatial (lane) axis; biased variance, no affine
        # (torch.nn.InstanceNorm3d defaults).  var clamped at 0 against f32 cancellation.
        inv_n = 1.0 / S
        s1 = jnp.sum(y, axis=1, keepdims=True)
        s2 = jnp.sum(y * y, axis=1, keepdims=True)
        mean = s1 * inv_n
        var = jnp.maximum(s2 * inv_n - mean * mean, 0.0)
        return (y - mean) * jax.lax.rsqrt(var + eps)

    def lrelu(y):
        return jnp.where(y > 0, y, alpha * y)

    out1 = lrelu(inorm(conv3x3x3(x, w1_ref)))
    out2 = lrelu(inorm(conv3x3x3(out1, w2_ref)) + x)     # residual from the resident x tile
    out3 = lrelu(inorm(jnp.dot(w3, out2.astype(jnp.bfloat16),
                               preferred_element_type=jnp.float32)))
    o_ref[0] = out3                                      # (planes_pad, S): lane-dense store


def basic_res_block(x_ncdhw, w1, w2, w3, *, lrelu_alpha=0.01, eps=1e-5):
    # x: (N, C, D, H, W) NCDHW; w1, w2: (C, C, 3, 3, 3) PyTorch conv weights; w3: (planes, C).
    N, C, D, H, W = x_ncdhw.shape
    S = D * H * W
    planes = w3.shape[0]
    Cp = _round_up(C, 8)            # sublane-aligned channel padding (exact, zeros)
    Pp = _round_up(planes, 8)

    # Channels-first lane-dense layout (N, C_pad, S) -- a free reshape + zero channel pad.
    x_flat = x_ncdhw.reshape(N, C, S).astype(jnp.float32)
    if Cp != C:
        x_flat = jnp.pad(x_flat, ((0, 0), (0, Cp - C), (0, 0)))

    def pack3(w):
        # (C_out, C_in, 3, 3, 3) -> (3, Cp, 9*Cp) bf16: kd-major groups, inner (kh, kw, ci)
        # matching the in-kernel tap order.
        co, ci = w.shape[0], w.shape[1]
        w = jnp.pad(w.astype(jnp.float32),
                    ((0, Cp - co), (0, Cp - ci), (0, 0), (0, 0), (0, 0)))
        w = jnp.transpose(w, (2, 0, 3, 4, 1)).reshape(3, Cp, 9 * Cp)
        return w.astype(jnp.bfloat16)

    w1p, w2p = pack3(w1), pack3(w2)
    w3p = jnp.pad(w3.astype(jnp.float32).reshape(planes, C),
                  ((0, Pp - planes), (0, Cp - C))).astype(jnp.bfloat16)

    kernel = functools.partial(_block_kernel, D=D, H=H, W=W, alpha=lrelu_alpha,
                               eps=eps, roll_subtracts=_roll_subtracts())
    out = pl.pallas_call(
        kernel,
        out_shape=jax.ShapeDtypeStruct((N, Pp, S), jnp.float32),
        grid=(N,),
        in_specs=[pl.BlockSpec((1, Cp, S), lambda n: (n, 0, 0)),
                  pl.BlockSpec((3, Cp, 9 * Cp), lambda n: (0, 0, 0)),
                  pl.BlockSpec((3, Cp, 9 * Cp), lambda n: (0, 0, 0)),
                  pl.BlockSpec((Pp, Cp), lambda n: (0, 0))],
        out_specs=pl.BlockSpec((1, Pp, S), lambda n: (n, 0, 0)),
        compiler_params=pltpu.CompilerParams(dimension_semantics=("parallel",)),
    )(x_flat, w1p, w2p, w3p)
    return out[:, :planes, :].reshape(N, planes, D, H, W)


def _reference(x, w1, w2, w3, *, alpha=0.01, eps=1e-5):
    dn = ("NCDHW", "OIDHW", "NCDHW")

    def conv3(h, w):
        return jax.lax.conv_general_dilated(h, w, (1, 1, 1), [(1, 1)] * 3,
                                            dimension_numbers=dn)

    def inorm(h):
        m = jnp.mean(h, axis=(2, 3, 4), keepdims=True)
        v = jnp.mean((h - m) ** 2, axis=(2, 3, 4), keepdims=True)
        return (h - m) * jax.lax.rsqrt(v + eps)

    def act(h):
        return jnp.where(h > 0, h, alpha * h)

    out = act(inorm(conv3(x, w1)))
    out = act(inorm(conv3(out, w2)) + x)
    out = act(inorm(jnp.einsum("ncdhw,oc->nodhw", out, w3)))
    return out


if __name__ == "__main__":
    N, C, D, H, W = 2, 4, 8, 8, 8     # small NCDHW input
    planes = 8
    alpha = 0.01

    key = jax.random.PRNGKey(0)
    kx, k1, k2, k3 = jax.random.split(key, 4)
    x = jax.random.normal(kx, (N, C, D, H, W), jnp.float32)
    w1 = jax.random.normal(k1, (C, C, 3, 3, 3), jnp.float32) * (1.0 / math.sqrt(27 * C))
    w2 = jax.random.normal(k2, (C, C, 3, 3, 3), jnp.float32) * (1.0 / math.sqrt(27 * C))
    w3 = jax.random.normal(k3, (planes, C), jnp.float32) * (1.0 / math.sqrt(C))

    _roll_subtracts()   # populate the cached roll-convention probe outside the jit trace

    fn = jax.jit(functools.partial(basic_res_block, lrelu_alpha=alpha))
    out = jax.block_until_ready(fn(x, w1, w2, w3))

    ref = jax.block_until_ready(_reference(x, w1, w2, w3, alpha=alpha, eps=1e-5))
    assert out.shape == (N, planes, D, H, W), out.shape
    np.testing.assert_allclose(np.asarray(out), np.asarray(ref), rtol=5e-2, atol=5e-2)
    print("KERNEL_OK")
</pallas_src>

<mosaic_0001>
module attributes {stable_mosaic.version = 11 : i64} {
  func.func @k(%arg0: memref<8x128xi32, #tpu.memory_space<vmem>>, %arg1: memref<8x128xi32, #tpu.memory_space<vmem>>) attributes {dimension_semantics = [], scalar_prefetch = 0 : i64, scratch_operands = 0 : i64, tpu.core_type = #tpu.core_type<tc>} {
    %c0 = arith.constant 0 : index
    %c0_0 = arith.constant 0 : index
    %0 = vector.load %arg0[%c0, %c0_0] : memref<8x128xi32, #tpu.memory_space<vmem>>, vector<8x128xi32>
    %c1_i32 = arith.constant 1 : i32
    %1 = tpu.dynamic_rotate %0 by %c1_i32 dim 1 : vector<8x128xi32>, i32 -> vector<8x128xi32>
    %c0_1 = arith.constant 0 : index
    %c0_2 = arith.constant 0 : index
    %2 = vector.load %arg1[%c0_1, %c0_2] : memref<8x128xi32, #tpu.memory_space<vmem>>, vector<8x128xi32>
    tpu.vector_store %arg1[%c0_1, %c0_2], %1 {strides = array<i32>} : memref<8x128xi32, #tpu.memory_space<vmem>>, vector<8x128xi32>,
    return
  }
}

</mosaic_0001>

<llo_original>
// kernel: tpu_custom_call.1
$region0: #{tpu_custom_call.1}
  #allocation0 [shape = 'u32[]', space=smem, size = 0x4, offset = 0x4, fixed_abs, tag = 'smem constant byte address 0x4 - core index']
  #allocation1 [shape = 'u32[144,128]{1,0:T(1,128)}', space=vmem, size = 0x12000, scoped, tag = 'internal scratch']
  %s0 = inlined_call_operand.hbm [shape: s32[8,128], index: 0, kind: input, shape index: {}]
  %s1 = inlined_call_operand.hbm [shape: s32[8,128], index: 1, kind: output, shape index: {}]
  %s2 = sld [smem:[#allocation0]]
  $region18: #{tpu_custom_call.1} parent=0
    _
  %s4 = ssub.s32 1, %s2
  %s5 = scalar_select 0, %s4, %s2
  $region1: #{tpu_custom_call.1} parent=0
    #allocation2 [shape = 'u8[4096]{0}', space=vmem, size = 0x1000, scoped, tag = 'input window, operand 0, single buffered']
    #allocation3 [shape = 's32[1]{0}', space=sflag, size = 0x4, scoped, tag = 'scoped memory for tpu_custom_call.1']
    #allocation4 [shape = 's32[1]{0}', space=sflag, size = 0x4, scoped, tag = 'scoped memory for tpu_custom_call.1']
    #allocation5 [shape = 'u8[4096]{0}', space=vmem, size = 0x1000, scoped, tag = 'output window, operand 0, single buffered']
    %6 = vsyncpa [#allocation3], 0
    %7 = vsyncpa [#allocation4], 0
    // Predicated region
    $region2: #{tpu_custom_call.1} parent=1 // pred_check
      _
    $region3: #{tpu_custom_call.1} parent=1 // pred_check_branch
      %9 = sbr.rel (0) target = $region5
    $region4: #{tpu_custom_call.1} parent=1 // pred_region
      %s11 = ssub.s32 128, 128
      %12 = vsyncadd [#allocation3], %s11
      %s14 = sshll.u32 [#allocation2], 4
      %s15 = int_to_ptr.vmem [resolvable:$true] %s14
      %17 = dma.hbm_to_vmem [thread:$0]  %s0, 128, %s15, [#allocation3]
    $region5: #{tpu_custom_call.1} parent=1 // pred_fallthru
      _
    // Predicated region
    $region6: #{tpu_custom_call.1} parent=1 // pred_check
      _
    $region7: #{tpu_custom_call.1} parent=1 // pred_check_branch
      %19 = sbr.rel (0) target = $region9
    $region8: #{tpu_custom_call.1} parent=1 // pred_region
      %20 = dma.done [#allocation3], 128
    $region9: #{tpu_custom_call.1} parent=1 // pred_fallthru
      _
    %v21 = vld [vmem:[#allocation2] sm:$0xff]
    %22 = vrot.lane.b32.xlu0 %v21, 1
    %v23 = vpop.permute.xlu0 %22
    %24 = vst [vmem:[#allocation5] sm:$0xff] %v23
    // Predicated region
    $region10: #{tpu_custom_call.1} parent=1 // pred_check
      _
    $region11: #{tpu_custom_call.1} parent=1 // pred_check_branch
      %26 = sbr.rel (0) target = $region13
    $region12: #{tpu_custom_call.1} parent=1 // pred_region
      %s28 = ssub.s32 128, 128
      %29 = vsyncadd [#allocation4], %s28
      %s31 = sshll.u32 [#allocation5], 4
      %s32 = int_to_ptr.vmem [resolvable:$true] %s31
      %34 = dma.vmem_to_hbm [thread:$0]  %s32, 128, %s1, [#allocation4]
    $region13: #{tpu_custom_call.1} parent=1 // pred_fallthru
      _
    // Predicated region
    $region14: #{tpu_custom_call.1} parent=1 // pred_check
      _
    $region15: #{tpu_custom_call.1} parent=1 // pred_check_branch
      %36 = sbr.rel (0) target = $region17
    $region16: #{tpu_custom_call.1} parent=1 // pred_region
      %37 = dma.done [#allocation4], 128
    $region17: #{tpu_custom_call.1} parent=1 // pred_fallthru
      _
    %38 = vsyncpa [#allocation3], 1
    %39 = vsyncpa [#allocation4], 1

</llo_original>
